<compile_context>
chip_gen: v7x
topology: tpu7x:2x2x1
jax: 0.10.0
libtpu: 0.0.40
codegen_flags: <defaults>
</compile_context>

<pallas_src>
import jax
import jax.numpy as jnp
from jax.experimental import pallas as pl
from jax.experimental.pallas import tpu as pltpu

BN_EPS = 1e-5
LANE = 128


def _round_up(x, m):
    return ((x + m - 1) // m) * m


def _value_kernel(x_ref, w1_ref, w2_ref, vec_ref, bv_ref, out_ref):
    # Static sizes (trace-time constants).
    h1p = w1_ref.shape[1]
    h2p = w2_ref.shape[1]

    # Packed 1-row vectors: [ b1 | b2 | wv ], 128-lane-aligned static slices.
    b1 = vec_ref[:, 0:h1p]                         # (1, H1P)
    b2 = vec_ref[:, h1p:h1p + h2p]                 # (1, H2P)
    wv = vec_ref[:, h1p + h2p:h1p + 2 * h2p]       # (1, H2P)

    x = x_ref[...]                                 # (TB, D)

    # layer 1: Linear (BN pre-folded) -> ReLU      (TB, H1P), lane-dense
    h = jnp.dot(x, w1_ref[...], preferred_element_type=jnp.float32) + b1
    h = jnp.maximum(h, 0.0)

    # layer 2: Linear (BN pre-folded) -> ReLU      (TB, H2P)
    h = jnp.dot(h, w2_ref[...], preferred_element_type=jnp.float32) + b2
    h = jnp.maximum(h, 0.0)

    # value head: N=1 matmul as VPU multiply + lane reduction (XLU slot is idle).
    v = jnp.sum(h * wv, axis=-1, keepdims=True)    # (TB, 1)
    out_ref[...] = v + bv_ref[0]


def value_forward(x, fused, *, batch_tile=512):
    """x: (B, state_dim) f32. fused: output of prepare_params()."""
    B, D = x.shape
    w1, w2, vec, bv = fused["w1"], fused["w2"], fused["vec"], fused["bv"]
    h1p = w1.shape[1]
    h2p = w2.shape[1]
    vec_len = vec.shape[1]

    # Batch tiling: small batches run as a single grid step; large batches are
    # tiled so the per-call overhead and weight DMAs are amortized across steps
    # (weights have constant index_maps -> fetched once, VMEM-resident).
    batch_tile = _round_up(batch_tile, 8)
    tb = min(batch_tile, _round_up(B, 8))
    bp = _round_up(B, tb)
    if bp != B:
        x = jnp.pad(x, ((0, bp - B), (0, 0)))      # padded rows sliced off below
    grid = (bp // tb,)

    flops = 2 * bp * (D * h1p + h1p * h2p + h2p)
    bytes_accessed = (x.size + w1.size + w2.size + vec.size + bv.size + bp) * 4

    out = pl.pallas_call(
        _value_kernel,
        out_shape=jax.ShapeDtypeStruct((bp, 1), jnp.float32),
        grid=grid,
        in_specs=[
            pl.BlockSpec((tb, D), lambda i: (i, 0)),          # x: tiled on batch
            pl.BlockSpec((D, h1p), lambda i: (0, 0)),         # w1: resident
            pl.BlockSpec((h1p, h2p), lambda i: (0, 0)),       # w2: resident
            pl.BlockSpec((1, vec_len), lambda i: (0, 0)),     # packed b1|b2|wv
            pl.BlockSpec(memory_space=pltpu.MemorySpace.SMEM),  # bv: (1,) scalar
        ],
        out_specs=pl.BlockSpec((tb, 1), lambda i: (i, 0)),
        compiler_params=pltpu.CompilerParams(
            dimension_semantics=("parallel",)),
        cost_estimate=pl.CostEstimate(
            flops=flops, transcendentals=0, bytes_accessed=bytes_accessed),
    )(x, w1, w2, vec, bv)

    return out[:B]


def init_params(key, state_dim, hidden_size=(200, 128)):
    """Deterministic synthetic parameters (same shapes as the PyTorch module)."""
    h1, h2 = hidden_size
    keys = jax.random.split(key, 8)

    def lin(kw, kb, fan_in, fan_out):
        # PyTorch Linear weight is (out, in); store transposed as (in, out).
        w = jax.random.normal(kw, (fan_in, fan_out), jnp.float32) * 0.1
        b = jax.random.normal(kb, (1, fan_out), jnp.float32) * 0.01
        return w, b

    w1, b1 = lin(keys[0], keys[1], state_dim, h1)
    w2, b2 = lin(keys[2], keys[3], h1, h2)
    wv, bv = lin(keys[4], keys[5], h2, 1)

    def bn(kg, nh):
        g = 1.0 + 0.1 * jax.random.normal(kg, (1, nh), jnp.float32)
        be = jnp.zeros((1, nh), jnp.float32)
        m = jnp.zeros((1, nh), jnp.float32)          # running_mean init
        v = jnp.ones((1, nh), jnp.float32)           # running_var init
        return g, be, m, v

    g1, be1, m1, v1 = bn(keys[6], h1)
    g2, be2, m2, v2 = bn(keys[7], h2)

    return dict(
        w1=w1, b1=b1, g1=g1, be1=be1, m1=m1, v1=v1,
        w2=w2, b2=b2, g2=g2, be2=be2, m2=m2, v2=v2,
        wv=wv, bv=bv,
    )


def prepare_params(p):
    """One-time prep: fold eval-mode BN into Linear, pad to lane width, pack vectors."""
    def fold(w, b, g, be, m, v):
        scale = g * jax.lax.rsqrt(v + BN_EPS)          # (1, out)
        return w * scale, (b - m) * scale + be

    w1, b1 = fold(p["w1"], p["b1"], p["g1"], p["be1"], p["m1"], p["v1"])
    w2, b2 = fold(p["w2"], p["b2"], p["g2"], p["be2"], p["m2"], p["v2"])
    wv = p["wv"].reshape(1, -1)                        # (1, H2)

    h1, h2 = w1.shape[1], w2.shape[1]
    h1p, h2p = _round_up(h1, LANE), _round_up(h2, LANE)

    # Zero-pad H1 (200 -> 256) and H2 (already 128) so activations are lane-dense
    # and packed-vector slices are 128-aligned. Padding is inert: padded biases
    # are 0, the matching w2 rows are 0, and padded wv lanes are 0.
    w1 = jnp.pad(w1, ((0, 0), (0, h1p - h1)))
    b1 = jnp.pad(b1, ((0, 0), (0, h1p - h1)))
    w2 = jnp.pad(w2, ((0, h1p - h1), (0, h2p - h2)))
    b2 = jnp.pad(b2, ((0, 0), (0, h2p - h2)))
    wv = jnp.pad(wv, ((0, 0), (0, h2p - h2)))

    vec = jnp.concatenate([b1, b2, wv], axis=1)        # (1, H1P + 2*H2P) = (1, 512)
    bv = p["bv"].reshape(1)                            # 1-D SMEM scalar
    return dict(w1=w1, w2=w2, vec=vec, bv=bv)


def _reference_forward(x, p):
    """Pure-JAX reference (un-folded, un-padded) for correctness checking."""
    h = x @ p["w1"] + p["b1"]
    h = (h - p["m1"]) * jax.lax.rsqrt(p["v1"] + BN_EPS) * p["g1"] + p["be1"]
    h = jnp.maximum(h, 0.0)
    h = h @ p["w2"] + p["b2"]
    h = (h - p["m2"]) * jax.lax.rsqrt(p["v2"] + BN_EPS) * p["g2"] + p["be2"]
    h = jnp.maximum(h, 0.0)
    return h @ p["wv"] + p["bv"]


if __name__ == "__main__":
    key = jax.random.PRNGKey(0)
    k_x, k_p = jax.random.split(key)

    batch = 8
    state_dim = 32
    hidden_size = (200, 128)   # module defaults

    x = jax.random.normal(k_x, (batch, state_dim), jnp.float32)
    params = init_params(k_p, state_dim, hidden_size)
    fused = prepare_params(params)           # one-time BN fold + pad + pack

    out = jax.block_until_ready(value_forward(x, fused))

    ref = _reference_forward(x, params)
    assert out.shape == (batch, 1)
    assert jnp.allclose(out, ref, atol=1e-4, rtol=1e-4), "mismatch vs reference"

    print("KERNEL_OK")
</pallas_src>

<mosaic_0001>
module attributes {stable_mosaic.version = 11 : i64} {
  func.func @_value_kernel(%arg0: i32, %arg1: memref<8x32xf32, #tpu.memory_space<vmem>>, %arg2: memref<32x256xf32, #tpu.memory_space<vmem>>, %arg3: memref<256x128xf32, #tpu.memory_space<vmem>>, %arg4: memref<1x512xf32, #tpu.memory_space<vmem>>, %arg5: memref<1xf32, #tpu.memory_space<smem>>, %arg6: memref<8x1xf32, #tpu.memory_space<vmem>>) attributes {dimension_semantics = [#tpu.dimension_semantics<parallel>], iteration_bounds = array<i64: 1>, scalar_prefetch = 0 : i64, scratch_operands = 0 : i64, tpu.core_type = #tpu.core_type<tc>, window_params = [{transform_indices = @transform_0, window_bounds = array<i64: 8, 32>}, {pipeline_mode = #tpu.pipeline_mode<synchronous>, transform_indices = @transform_1, window_bounds = array<i64: 32, 256>}, {pipeline_mode = #tpu.pipeline_mode<synchronous>, transform_indices = @transform_2, window_bounds = array<i64: 256, 128>}, {pipeline_mode = #tpu.pipeline_mode<synchronous>, transform_indices = @transform_3, window_bounds = array<i64: 1, 512>}, {transform_indices = @transform_4, window_bounds = array<i64: 1>}, {transform_indices = @transform_5, window_bounds = array<i64: 8, 1>}]} {
    %c0 = arith.constant 0 : index
    %c0_0 = arith.constant 0 : index
    %0 = vector.load %arg4[%c0, %c0_0] : memref<1x512xf32, #tpu.memory_space<vmem>>, vector<1x256xf32>
    %c0_1 = arith.constant 0 : index
    %c256 = arith.constant 256 : index
    %1 = vector.load %arg4[%c0_1, %c256] : memref<1x512xf32, #tpu.memory_space<vmem>>, vector<1x128xf32>
    %c0_2 = arith.constant 0 : index
    %c384 = arith.constant 384 : index
    %2 = vector.load %arg4[%c0_2, %c384] : memref<1x512xf32, #tpu.memory_space<vmem>>, vector<1x128xf32>
    %c0_3 = arith.constant 0 : index
    %c0_4 = arith.constant 0 : index
    %3 = vector.load %arg1[%c0_3, %c0_4] : memref<8x32xf32, #tpu.memory_space<vmem>>, vector<8x32xf32>
    %c0_5 = arith.constant 0 : index
    %c0_6 = arith.constant 0 : index
    %4 = vector.load %arg2[%c0_5, %c0_6] : memref<32x256xf32, #tpu.memory_space<vmem>>, vector<32x256xf32>
    %cst = arith.constant dense<0.000000e+00> : vector<8x256xf32>
    %5 = tpu.matmul %3, %4, %cst {dimension_numbers = #tpu.dot_dimension_numbers<[1], [0], [0], [1], [0, 0, 1, 1], [], []>} : vector<8x32xf32>, vector<32x256xf32>, vector<8x256xf32> -> vector<8x256xf32>
    %6 = vector.broadcast %0 : vector<1x256xf32> to vector<8x256xf32>
    %7 = arith.addf %5, %6 : vector<8x256xf32>
    %cst_7 = arith.constant 0.000000e+00 : f32
    %8 = vector.broadcast %cst_7 : f32 to vector<8x256xf32>
    %9 = arith.maximumf %7, %8 : vector<8x256xf32>
    %c0_8 = arith.constant 0 : index
    %c0_9 = arith.constant 0 : index
    %10 = vector.load %arg3[%c0_8, %c0_9] : memref<256x128xf32, #tpu.memory_space<vmem>>, vector<256x128xf32>
    %cst_10 = arith.constant dense<0.000000e+00> : vector<8x128xf32>
    %11 = tpu.matmul %9, %10, %cst_10 {dimension_numbers = #tpu.dot_dimension_numbers<[1], [0], [0], [1], [0, 0, 1, 1], [], []>} : vector<8x256xf32>, vector<256x128xf32>, vector<8x128xf32> -> vector<8x128xf32>
    %12 = vector.broadcast %1 : vector<1x128xf32> to vector<8x128xf32>
    %13 = arith.addf %11, %12 : vector<8x128xf32>
    %cst_11 = arith.constant 0.000000e+00 : f32
    %14 = vector.broadcast %cst_11 : f32 to vector<8x128xf32>
    %15 = arith.maximumf %13, %14 : vector<8x128xf32>
    %16 = vector.broadcast %2 : vector<1x128xf32> to vector<8x128xf32>
    %17 = arith.mulf %15, %16 : vector<8x128xf32>
    %cst_12 = arith.constant dense<0.000000e+00> : vector<8xf32>
    %18 = vector.multi_reduction <add>, %17, %cst_12 [1] : vector<8x128xf32> to vector<8xf32>
    %19 = vector.shape_cast %18 : vector<8xf32> to vector<8x1xf32>
    %c0_13 = arith.constant 0 : index
    %20 = memref.load %arg5[%c0_13] : memref<1xf32, #tpu.memory_space<smem>>
    %21 = vector.broadcast %20 : f32 to vector<8x1xf32>
    %22 = arith.addf %19, %21 : vector<8x1xf32>
    %c0_14 = arith.constant 0 : index
    %c0_15 = arith.constant 0 : index
    %23 = vector.load %arg6[%c0_14, %c0_15] : memref<8x1xf32, #tpu.memory_space<vmem>>, vector<8x1xf32>
    tpu.vector_store %arg6[%c0_14, %c0_15], %22 {strides = array<i32>} : memref<8x1xf32, #tpu.memory_space<vmem>>, vector<8x1xf32>,
    return
  }
  func.func @transform_0(%arg0: i32) -> (i32, i32) {
    %c0_i32 = arith.constant 0 : i32
    %c0_i32_0 = arith.constant 0 : i32
    return %arg0, %c0_i32 : i32, i32
  }
  func.func @transform_1(%arg0: i32) -> (i32, i32) {
    %c0_i32 = arith.constant 0 : i32
    %c0_i32_0 = arith.constant 0 : i32
    %c0_i32_1 = arith.constant 0 : i32
    return %c0_i32, %c0_i32_0 : i32, i32
  }
  func.func @transform_2(%arg0: i32) -> (i32, i32) {
    %c0_i32 = arith.constant 0 : i32
    %c0_i32_0 = arith.constant 0 : i32
    %c0_i32_1 = arith.constant 0 : i32
    return %c0_i32, %c0_i32_0 : i32, i32
  }
  func.func @transform_3(%arg0: i32) -> (i32, i32) {
    %c0_i32 = arith.constant 0 : i32
    %c0_i32_0 = arith.constant 0 : i32
    %c0_i32_1 = arith.constant 0 : i32
    return %c0_i32, %c0_i32_0 : i32, i32
  }
  func.func @transform_4(%arg0: i32) -> i32 {
    %c0_i32 = arith.constant 0 : i32
    %c0_i32_0 = arith.constant 0 : i32
    return %c0_i32 : i32
  }
  func.func @transform_5(%arg0: i32) -> (i32, i32) {
    %c0_i32 = arith.constant 0 : i32
    %c0_i32_0 = arith.constant 0 : i32
    return %arg0, %c0_i32 : i32, i32
  }
}

</mosaic_0001>

<llo_original>
// kernel: tpu_custom_call.1
$region0: #{tpu_custom_call.1}
  #allocation0 [shape = 'u32[]', space=smem, size = 0x4, offset = 0x4, fixed_abs, tag = 'smem constant byte address 0x4 - core index']
  #allocation1 [shape = 'u32[144,128]{1,0:T(1,128)}', space=vmem, size = 0x12000, scoped, tag = 'internal scratch']
  #allocation2 [shape = 'f32[1]{0:T(128)S(6)}', space=smem, size = 0x200, scoped, tag = 'scoped memory for tpu_custom_call.1']
  %s0 = inlined_call_operand.hbm [shape: f32[8,32], index: 0, kind: input, shape index: {}]
  %s1 = inlined_call_operand.hbm [shape: f32[32,256], index: 1, kind: input, shape index: {}]
  %s2 = inlined_call_operand.hbm [shape: f32[256,128], index: 2, kind: input, shape index: {}]
  %s3 = inlined_call_operand.vmem [shape: f32[1,512], index: 3, kind: input, shape index: {}]
  %s4 = inlined_call_operand.<no memory space> [shape: f32[1], index: 4, kind: input, shape index: {}]
  %s5 = inlined_call_operand.vmem [shape: f32[8,1], index: 5, kind: output, shape index: {}]
  %s6 = sld [smem:[#allocation0]]
  $region42: #{tpu_custom_call.1} parent=0
    _
  %s8 = ssub.s32 1, %s6
  %s9 = scalar_select 0, %s8, %s6
  %10 = sst [smem:[#allocation2]] %s4
  $region1: #{tpu_custom_call.1} parent=0
    #allocation3 [shape = 'u8[4096]{0}', space=vmem, size = 0x1000, scoped, tag = 'input window, operand 0, single buffered']
    #allocation4 [shape = 's32[1]{0}', space=sflag, size = 0x4, scoped, tag = 'scoped memory for tpu_custom_call.1']
    #allocation5 [shape = 'u8[32768]{0}', space=vmem, size = 0x8000, scoped, tag = 'input window, operand 1, single buffered']
    #allocation6 [shape = 's32[1]{0}', space=sflag, size = 0x4, scoped, tag = 'scoped memory for tpu_custom_call.1']
    #allocation7 [shape = 'u8[131072]{0}', space=vmem, size = 0x20000, scoped, tag = 'input window, operand 2, single buffered']
    %11 = vsyncpa [#allocation4], 0
    %12 = vsyncpa [#allocation6], 0
    // Predicated region
    $region2: #{tpu_custom_call.1} parent=1 // pred_check
      _
    $region3: #{tpu_custom_call.1} parent=1 // pred_check_branch
      %14 = sbr.rel (0) target = $region5
    $region4: #{tpu_custom_call.1} parent=1 // pred_region
      %s16 = ssub.s32 128, 128
      %17 = vsyncadd [#allocation4], %s16
      %s19 = sshll.u32 [#allocation3], 4
      %s20 = int_to_ptr.vmem [resolvable:$true] %s19
      %22 = dma.hbm_to_vmem [thread:$0]  %s0, 128, %s20, [#allocation4]
    $region5: #{tpu_custom_call.1} parent=1 // pred_fallthru
      _
    // Predicated region
    $region6: #{tpu_custom_call.1} parent=1 // pred_check
      _
    $region7: #{tpu_custom_call.1} parent=1 // pred_check_branch
      %24 = sbr.rel (0) target = $region9
    $region8: #{tpu_custom_call.1} parent=1 // pred_region
      %s26 = ssub.s32 1024, 1024
      %27 = vsyncadd [#allocation6], %s26
      %s28 = sshll.u32 [#allocation5], 4
      %s29 = int_to_ptr.vmem [resolvable:$true] %s28
      %34 = dma.hbm_to_vmem [thread:$0]  %s1, 1024, %s29, [#allocation6], 256, 256, 16
    $region9: #{tpu_custom_call.1} parent=1 // pred_fallthru
      _
    // Predicated region
    $region10: #{tpu_custom_call.1} parent=1 // pred_check
      _
    $region11: #{tpu_custom_call.1} parent=1 // pred_check_branch
      %36 = sbr.rel (0) target = $region13
    $region12: #{tpu_custom_call.1} parent=1 // pred_region
      %s38 = ssub.s32 4096, 4096
      %39 = vsyncadd [#allocation6], %s38
      %s40 = sshll.u32 [#allocation7], 4
      %s41 = int_to_ptr.vmem [resolvable:$true] %s40
      %46 = dma.hbm_to_vmem [thread:$0]  %s2, 4096, %s41, [#allocation6], 128, 128, 8
    $region13: #{tpu_custom_call.1} parent=1 // pred_fallthru
      _
    // Predicated region
    $region14: #{tpu_custom_call.1} parent=1 // pred_check
      _
    $region15: #{tpu_custom_call.1} parent=1 // pred_check_branch
      %48 = sbr.rel (0) target = $region17
    $region16: #{tpu_custom_call.1} parent=1 // pred_region
      _
    $region17: #{tpu_custom_call.1} parent=1 // pred_fallthru
      _
    // Predicated region
    $region18: #{tpu_custom_call.1} parent=1 // pred_check
      _
    $region19: #{tpu_custom_call.1} parent=1 // pred_check_branch
      %50 = sbr.rel (0) target = $region21
    $region20: #{tpu_custom_call.1} parent=1 // pred_region
      _
    $region21: #{tpu_custom_call.1} parent=1 // pred_fallthru
      _
    // Predicated region
    $region22: #{tpu_custom_call.1} parent=1 // pred_check
      _
    $region23: #{tpu_custom_call.1} parent=1 // pred_check_branch
      %52 = sbr.rel (0) target = $region25
    $region24: #{tpu_custom_call.1} parent=1 // pred_region
      %53 = dma.done [#allocation4], 128
    $region25: #{tpu_custom_call.1} parent=1 // pred_fallthru
      _
    // Predicated region
    $region26: #{tpu_custom_call.1} parent=1 // pred_check
      _
    $region27: #{tpu_custom_call.1} parent=1 // pred_check_branch
      %55 = sbr.rel (0) target = $region29
    $region28: #{tpu_custom_call.1} parent=1 // pred_region
      %56 = dma.done [#allocation6], 1024
    $region29: #{tpu_custom_call.1} parent=1 // pred_fallthru
      _
    // Predicated region
    $region30: #{tpu_custom_call.1} parent=1 // pred_check
      _
    $region31: #{tpu_custom_call.1} parent=1 // pred_check_branch
      %58 = sbr.rel (0) target = $region33
    $region32: #{tpu_custom_call.1} parent=1 // pred_region
      %59 = dma.done [#allocation6], 4096
    $region33: #{tpu_custom_call.1} parent=1 // pred_fallthru
      _
    %v60 = vld [vmem:[%s3] sm:$0x3]
    %v61 = vld [vmem:[%s3 + $0x2] sm:$0x1]
    %v62 = vld [vmem:[%s3 + $0x3] sm:$0x1]
    %v63 = vld [vmem:[#allocation3] sm:$0xff]
    %v64 = vld [vmem:[#allocation5] sm:$0xff]
    %v65 = vld [vmem:[#allocation5 + $0x8] sm:$0xff]
    %v66 = vld [vmem:[#allocation5 + $0x10] sm:$0xff]
    %v67 = vld [vmem:[#allocation5 + $0x18] sm:$0xff]
    %v68 = vld [vmem:[#allocation5 + $0x20] sm:$0xff]
    %v69 = vld [vmem:[#allocation5 + $0x28] sm:$0xff]
    %v70 = vld [vmem:[#allocation5 + $0x30] sm:$0xff]
    %v71 = vld [vmem:[#allocation5 + $0x38] sm:$0xff]
    %v73 = vlaneseq
    %v74 = vshrl.u32 %v73, 7
    %v75 = vsub.s32 0, %v74
    %v76 = vrot.slane %v60, %v75
    %v77 = vlaneseq
    %v78 = vshrl.u32 %v77, 7
    %v79 = vsub.s32 1, %v78
    %v80 = vrot.slane %v60, %v79
    %vm83 = vcmask 261120
    %v85 = vsel %vm83, %v63, 0
    %87 = vmatprep.subr.mxu0 %v65
    %88 = vmatpush1.msra.mxu0 %v64
    %89 = vmatprep.subr.mxu0 %v67
    %90 = vmatpush1.msra.mxu0 %v66
    %91 = vmatprep.subr.mxu0 %v69
    %92 = vmatpush1.msra.mxu0 %v68
    %93 = vmatprep.subr.mxu0 %v71
    %94 = vmatpush1.msra.mxu0 %v70
    %95 = vmatprep.subr.mxu0 0.0
    %96 = vmatpush1.msra.mxu0 0.0
    %97 = vmatprep.subr.mxu0 0.0
    %98 = vmatpush1.msra.mxu0 0.0
    %99 = vmatprep.subr.mxu0 0.0
    %100 = vmatpush1.msra.mxu0 0.0
    %101 = vmatprep.subr.mxu0 0.0
    %102 = vmatpush1.msra.mxu0 0.0
    %103 = vmatprep.subr.mxu0 0.0
    %104 = vmatpush1.msra.mxu0 0.0
    %105 = vmatprep.subr.mxu0 0.0
    %106 = vmatpush1.msra.mxu0 0.0
    %107 = vmatprep.subr.mxu0 0.0
    %108 = vmatpush1.msra.mxu0 0.0
    %109 = vmatprep.subr.mxu0 0.0
    %110 = vmatpush1.msra.mxu0 0.0
    %111 = vmatprep.subr.mxu0 0.0
    %112 = vmatpush1.msra.mxu0 0.0
    %113 = vmatprep.subr.mxu0 0.0
    %114 = vmatpush1.msra.mxu0 0.0
    %115 = vmatprep.subr.mxu0 0.0
    %116 = vmatpush1.msra.mxu0 0.0
    %117 = vmatprep.subr.mxu0 0.0
    %118 = vmatpush1.msra.mxu0 0.0
    %119 = vmatprep.subr.mxu0 0.0
    %120 = vmatpush1.msra.mxu0 0.0
    %121 = vmatprep.subr.mxu0 0.0
    %122 = vmatpush1.msra.mxu0 0.0
    %123 = vmatprep.subr.mxu0 0.0
    %124 = vmatpush1.msra.mxu0 0.0
    %125 = vmatprep.subr.mxu0 0.0
    %126 = vmatpush1.msra.mxu0 0.0
    %127 = vmatprep.subr.mxu0 0.0
    %128 = vmatpush1.msra.mxu0 0.0
    %129 = vmatprep.subr.mxu0 0.0
    %130 = vmatpush1.msra.mxu0 0.0
    %131 = vmatprep.subr.mxu0 0.0
    %132 = vmatpush1.msra.mxu0 0.0
    %133 = vmatprep.subr.mxu0 0.0
    %134 = vmatpush1.msra.mxu0 0.0
    %135 = vmatprep.subr.mxu0 0.0
    %136 = vmatpush1.msra.mxu0 0.0
    %137 = vmatprep.subr.mxu0 0.0
    %138 = vmatpush1.msra.mxu0 0.0
    %139 = vmatprep.subr.mxu0 0.0
    %140 = vmatpush1.msra.mxu0 0.0
    %141 = vmatprep.subr.mxu0 0.0
    %142 = vmatpush1.msra.mxu0 0.0
    %143 = vmatprep.subr.mxu0 0.0
    %144 = vmatpush1.msra.mxu0 0.0
    %145 = vmatprep.subr.mxu0 0.0
    %146 = vmatpush1.msra.mxu0 0.0
    %147 = vmatprep.subr.mxu0 0.0
    %148 = vmatpush1.msra.mxu0 0.0
    %149 = vmatprep.subr.mxu0 0.0
    %150 = vmatpush1.msra.mxu0 0.0
    %151 = vmatprep.mubr.f32.mxu0 0.0
    %152 = vmatmul.mubr.f32.gmra.mrb[0].mxu0 %v85
    %v153 = vpop.f32.mrb[0].mxu0
    %v154 = vadd.f32 %v76, %v153
    %v155 = vpop.f32.mrb[0].mxu0
    %v156 = vadd.f32 %v80, %v155
    %157 = vdwg.mxu0
    %v158 = vmax.f32 %v154, 0.0
    %v159 = vmax.f32 %v156, 0.0
    %v160 = vld [vmem:[#allocation7] sm:$0xff]
    %v161 = vld [vmem:[#allocation7 + $0x8] sm:$0xff]
    %v162 = vld [vmem:[#allocation7 + $0x10] sm:$0xff]
    %v163 = vld [vmem:[#allocation7 + $0x18] sm:$0xff]
    %v164 = vld [vmem:[#allocation7 + $0x20] sm:$0xff]
    %v165 = vld [vmem:[#allocation7 + $0x28] sm:$0xff]
    %v166 = vld [vmem:[#allocation7 + $0x30] sm:$0xff]
    %v167 = vld [vmem:[#allocation7 + $0x38] sm:$0xff]
    %v168 = vld [vmem:[#allocation7 + $0x40] sm:$0xff]
    %v169 = vld [vmem:[#allocation7 + $0x48] sm:$0xff]
    %v170 = vld [vmem:[#allocation7 + $0x50] sm:$0xff]
    %v171 = vld [vmem:[#allocation7 + $0x58] sm:$0xff]
    %v172 = vld [vmem:[#allocation7 + $0x60] sm:$0xff]
    %v173 = vld [vmem:[#allocation7 + $0x68] sm:$0xff]
    %v174 = vld [vmem:[#allocation7 + $0x70] sm:$0xff]
    %v175 = vld [vmem:[#allocation7 + $0x78] sm:$0xff]
    %v176 = vld [vmem:[#allocation7 + $0x80] sm:$0xff]
    %v177 = vld [vmem:[#allocation7 + $0x88] sm:$0xff]
    %v178 = vld [vmem:[#allocation7 + $0x90] sm:$0xff]
    %v179 = vld [vmem:[#allocation7 + $0x98] sm:$0xff]
    %v180 = vld [vmem:[#allocation7 + $0xa0] sm:$0xff]
    %v181 = vld [vmem:[#allocation7 + $0xa8] sm:$0xff]
    %v182 = vld [vmem:[#allocation7 + $0xb0] sm:$0xff]
    %v183 = vld [vmem:[#allocation7 + $0xb8] sm:$0xff]
    %v184 = vld [vmem:[#allocation7 + $0xc0] sm:$0xff]
    %v185 = vld [vmem:[#allocation7 + $0xc8] sm:$0xff]
    %v186 = vld [vmem:[#allocation7 + $0xd0] sm:$0xff]
    %v187 = vld [vmem:[#allocation7 + $0xd8] sm:$0xff]
    %v188 = vld [vmem:[#allocation7 + $0xe0] sm:$0xff]
    %v189 = vld [vmem:[#allocation7 + $0xe8] sm:$0xff]
    %v190 = vld [vmem:[#allocation7 + $0xf0] sm:$0xff]
    %v191 = vld [vmem:[#allocation7 + $0xf8] sm:$0xff]
    %v193 = vlaneseq
    %v194 = vshrl.u32 %v193, 7
    %v195 = vsub.s32 0, %v194
    %v196 = vrot.slane %v61, %v195
    %198 = vmatprep.subr.mxu0 0.0
    %199 = vmatpush1.msra.mxu0 %v160
    %200 = vmatprep.subr.mxu0 0.0
    %201 = vmatpush1.msra.mxu0 %v161
    %202 = vmatprep.subr.mxu0 0.0
    %203 = vmatpush1.msra.mxu0 %v162
    %204 = vmatprep.subr.mxu0 0.0
    %205 = vmatpush1.msra.mxu0 %v163
    %206 = vmatprep.subr.mxu0 0.0
    %207 = vmatpush1.msra.mxu0 %v164
    %208 = vmatprep.subr.mxu0 0.0
    %209 = vmatpush1.msra.mxu0 %v165
    %210 = vmatprep.subr.mxu0 0.0
    %211 = vmatpush1.msra.mxu0 %v166
    %212 = vmatprep.subr.mxu0 0.0
    %213 = vmatpush1.msra.mxu0 %v167
    %214 = vmatprep.subr.mxu0 0.0
    %215 = vmatpush1.msra.mxu0 %v168
    %216 = vmatprep.subr.mxu0 0.0
    %217 = vmatpush1.msra.mxu0 %v169
    %218 = vmatprep.subr.mxu0 0.0
    %219 = vmatpush1.msra.mxu0 %v170
    %220 = vmatprep.subr.mxu0 0.0
    %221 = vmatpush1.msra.mxu0 %v171
    %222 = vmatprep.subr.mxu0 0.0
    %223 = vmatpush1.msra.mxu0 %v172
    %224 = vmatprep.subr.mxu0 0.0
    %225 = vmatpush1.msra.mxu0 %v173
    %226 = vmatprep.subr.mxu0 0.0
    %227 = vmatpush1.msra.mxu0 %v174
    %228 = vmatprep.subr.mxu0 0.0
    %229 = vmatpush1.msra.mxu0 %v175
    %230 = vmatprep.subr.mxu0 0.0
    %231 = vmatpush1.msra.mxu0 %v176
    %232 = vmatprep.subr.mxu0 0.0
    %233 = vmatpush1.msra.mxu0 %v177
    %234 = vmatprep.subr.mxu0 0.0
    %235 = vmatpush1.msra.mxu0 %v178
    %236 = vmatprep.subr.mxu0 0.0
    %237 = vmatpush1.msra.mxu0 %v179
    %238 = vmatprep.subr.mxu0 0.0
    %239 = vmatpush1.msra.mxu0 %v180
    %240 = vmatprep.subr.mxu0 0.0
    %241 = vmatpush1.msra.mxu0 %v181
    %242 = vmatprep.subr.mxu0 0.0
    %243 = vmatpush1.msra.mxu0 %v182
    %244 = vmatprep.subr.mxu0 0.0
    %245 = vmatpush1.msra.mxu0 %v183
    %246 = vmatprep.subr.mxu0 0.0
    %247 = vmatpush1.msra.mxu0 %v184
    %248 = vmatprep.subr.mxu0 0.0
    %249 = vmatpush1.msra.mxu0 %v185
    %250 = vmatprep.subr.mxu0 0.0
    %251 = vmatpush1.msra.mxu0 %v186
    %252 = vmatprep.subr.mxu0 0.0
    %253 = vmatpush1.msra.mxu0 %v187
    %254 = vmatprep.subr.mxu0 0.0
    %255 = vmatpush1.msra.mxu0 %v188
    %256 = vmatprep.subr.mxu0 0.0
    %257 = vmatpush1.msra.mxu0 %v189
    %258 = vmatprep.subr.mxu0 0.0
    %259 = vmatpush1.msra.mxu0 %v190
    %260 = vmatprep.subr.mxu0 0.0
    %261 = vmatpush1.msra.mxu0 %v191
    %262 = vmatprep.mubr.f32.mxu0 %v159
    %263 = vmatmul.mubr.f32.gmra.mrb[0].mxu0 %v158
    %v264 = vpop.f32.mrb[0].mxu0
    %v265 = vadd.f32 %v196, %v264
    %v266 = vpop.f32.mrb[0].mxu0
    %267 = vdwg.mxu0
    %v268 = vmax.f32 %v265, 0.0
    %v270 = vlaneseq
    %v271 = vshrl.u32 %v270, 7
    %v272 = vsub.s32 0, %v271
    %v273 = vrot.slane %v62, %v272
    %v275 = vmul.f32 %v268, %v273
    %276 = vadd.xlane.f32.xlu0 %v275
    %v277 = vpop.xlane.xlu0 %276
    %s278 = sld [smem:[#allocation2]]
    %v279 = vstv %s278
    %v280 = vadd.f32 %v277, %v279
    %vm281 = vcmask 7168
    %282 = vst.msk [vmem:[%s5] sm:$0xff] %vm281, %v280
    // Predicated region
    $region34: #{tpu_custom_call.1} parent=1 // pred_check
      _
    $region35: #{tpu_custom_call.1} parent=1 // pred_check_branch
      %284 = sbr.rel (0) target = $region37
    $region36: #{tpu_custom_call.1} parent=1 // pred_region
      _
    $region37: #{tpu_custom_call.1} parent=1 // pred_fallthru
      _
    // Predicated region
    $region38: #{tpu_custom_call.1} parent=1 // pred_check
      _
    $region39: #{tpu_custom_call.1} parent=1 // pred_check_branch
      %286 = sbr.rel (0) target = $region41
    $region40: #{tpu_custom_call.1} parent=1 // pred_region
      _
    $region41: #{tpu_custom_call.1} parent=1 // pred_fallthru
      _
    %287 = vsyncpa [#allocation4], 1
    %288 = vsyncpa [#allocation6], 1

</llo_original>
